<compile_context>
chip_gen: v7x
topology: tpu7x:2x2x1
jax: 0.10.0
libtpu: 0.0.40
codegen_flags: <defaults>
</compile_context>

<pallas_src>
import functools
import math

import jax
import jax.numpy as jnp
from jax.experimental import pallas as pl
from jax.experimental.pallas import tpu as pltpu


def _as_i32(v):
    """Python int -> equivalent signed 32-bit Python int (two's complement)."""
    v &= 0xFFFFFFFF
    return v - (1 << 32) if v >= (1 << 31) else v


_GOLDEN = 0x9E3779B9                               # Weyl increment
_PHI3 = _as_i32((3 * _GOLDEN) % (1 << 32))         # 3 * golden  (counter stride)
_JSALT = tuple(_as_i32((j * _GOLDEN) % (1 << 32)) for j in range(3))
_C1 = _as_i32(0x85EBCA6B)                          # murmur3 fmix32 constants
_C2 = _as_i32(0xC2B2AE35)

# Irwin-Hall(6) normal approximation: sum of 6 uniform 16-bit ints.
_K = 6
_SUM_MEAN = _K * 32767.5
_SUM_INV_STD = 1.0 / math.sqrt(_K * ((65536.0 ** 2) - 1.0) / 12.0)


def _splitmix32(h):
    """splitmix32 / murmur3 finalizer on int32 (logical shifts via shift+mask)."""
    h = h ^ ((h >> 16) & 0xFFFF)
    h = h * _C1
    h = h ^ ((h >> 13) & 0x7FFFF)
    h = h * _C2
    h = h ^ ((h >> 16) & 0xFFFF)
    return h


def _gaussian_noise_kernel(seed_ref, x_ref, o_ref, *, sigma, lanes, block_rows):
    pid = pl.program_id(0)
    seed = seed_ref[0]

    shape = (block_rows, lanes)
    row = jax.lax.broadcasted_iota(jnp.int32, shape, 0)
    col = jax.lax.broadcasted_iota(jnp.int32, shape, 1)
    # Global element index of every element in this block (int32; fine for any
    # realistic activation size).
    idx = pid * (block_rows * lanes) + row * lanes + col

    # Counter-based PRNG: unique counter (3*idx + j) -> Weyl step -> finalizer.
    wbase = idx * _PHI3 + seed
    acc = None
    for j in range(3):
        h = _splitmix32(wbase + _JSALT[j])
        u = ((h >> 16) & 0xFFFF) + (h & 0xFFFF)    # two 16-bit uniforms per hash
        acc = u if acc is None else acc + u

    # z ~ approx N(0, 1): exact mean 0 / std 1 by construction.
    z = (acc.astype(jnp.float32) - _SUM_MEAN) * _SUM_INV_STD

    x = x_ref[...].astype(jnp.float32)
    o_ref[...] = (x * (1.0 + sigma * z)).astype(o_ref.dtype)


def gaussian_noise(x, seed, *, sigma=0.1, is_relative_detach=True, training=True):
    """Pallas implementation of GaussianNoise.forward.

    `is_relative_detach` only changes gradient flow in PyTorch; forward values
    are identical, so it is accepted for API parity but unused here.
    # TODO(synk): gradient-detach semantics would need a custom_vjp; only the
    # forward pass is implemented.
    """
    del is_relative_detach
    if (not training) or sigma == 0.0:
        return x

    orig_shape = x.shape
    dtype = x.dtype
    n = int(math.prod(orig_shape)) if orig_shape else 1
    if n == 0:
        return x

    # Lane-dense 2-D view.  Avoid any padding whenever a wide lane width
    # divides numel (true for typical conv/linear activations).
    lanes = None
    for cand in (1024, 512, 256, 128):
        if n % cand == 0:
            lanes = cand
            break

    if lanes is None:
        # Ragged fallback: pad to a multiple of 128 (costs one extra HBM pass).
        lanes = 128
        padded_n = pl.cdiv(n, lanes) * lanes
        xf = jnp.pad(x.reshape(-1), (0, padded_n - n))
    else:
        padded_n = n
        xf = x.reshape(-1)

    rows = padded_n // lanes

    # ~512K elements per block (~2 MiB at f32): with in+out double-buffering
    # this stays well inside scoped VMEM on v5e/v6e/v7x while large enough to
    # hide the per-step pipeline overhead.
    target_rows = max(8, (512 * 1024) // lanes)
    if rows <= target_rows:
        block_rows = rows
        grid = (1,)
    else:
        block_rows = target_rows            # multiple of 8 -> valid sublane tile
        grid = (pl.cdiv(rows, block_rows),) # partial last block handled by Pallas

    x2d = xf.reshape(rows, lanes)
    seed_arr = jnp.asarray([seed], dtype=jnp.int32)

    kernel = functools.partial(
        _gaussian_noise_kernel, sigma=float(sigma), lanes=lanes, block_rows=block_rows
    )

    out2d = pl.pallas_call(
        kernel,
        out_shape=jax.ShapeDtypeStruct((rows, lanes), dtype),
        grid=grid,
        in_specs=[
            pl.BlockSpec(memory_space=pltpu.MemorySpace.SMEM),       # seed scalar
            pl.BlockSpec((block_rows, lanes), lambda i: (i, 0)),     # x tile
        ],
        out_specs=pl.BlockSpec((block_rows, lanes), lambda i: (i, 0)),
        compiler_params=pltpu.CompilerParams(
            dimension_semantics=("parallel",),
        ),
    )(seed_arr, x2d)

    out = out2d.reshape(-1)
    if padded_n != n:
        out = out[:n]
    return out.reshape(orig_shape)


if __name__ == "__main__":
    key = jax.random.PRNGKey(0)
    # NCHW input, as the PyTorch module would typically see from a conv stack.
    x = jax.random.normal(key, (2, 4, 16, 16), dtype=jnp.float32)
    sigma = 0.1

    y = jax.block_until_ready(gaussian_noise(x, seed=0, sigma=sigma, training=True))
    assert y.shape == x.shape and y.dtype == x.dtype

    # Noise must actually be applied.
    assert bool(jnp.any(jnp.abs(y - x) > 0.0))

    # Implied noise z = (y - x) / (sigma * x) should be ~N(0, 1).
    mask = jnp.abs(x) > 1e-3
    implied = jnp.where(mask, (y - x) / (sigma * x), 0.0)
    cnt = jnp.sum(mask)
    mean = jnp.sum(implied) / cnt
    var = jnp.sum(jnp.where(mask, (implied - mean) ** 2, 0.0)) / cnt
    std = jnp.sqrt(var)
    assert bool(jnp.abs(mean) < 0.2), float(mean)
    assert bool(jnp.abs(std - 1.0) < 0.2), float(std)

    # Different seed -> different noise.
    y2 = jax.block_until_ready(gaussian_noise(x, seed=1, sigma=sigma, training=True))
    assert bool(jnp.any(y2 != y))

    # Eval mode (and sigma == 0) are the identity.
    y_eval = jax.block_until_ready(gaussian_noise(x, seed=0, sigma=sigma, training=False))
    assert bool(jnp.all(y_eval == x))
    y_zero = jax.block_until_ready(gaussian_noise(x, seed=0, sigma=0.0, training=True))
    assert bool(jnp.all(y_zero == x))

    print("KERNEL_OK")
</pallas_src>

<mosaic_0001>
module attributes {stable_mosaic.version = 11 : i64} {
  func.func @_gaussian_noise_kernel(%arg0: i32, %arg1: memref<1xi32, #tpu.memory_space<smem>>, %arg2: memref<2x1024xf32, #tpu.memory_space<vmem>>, %arg3: memref<2x1024xf32, #tpu.memory_space<vmem>>) attributes {dimension_semantics = [#tpu.dimension_semantics<parallel>], iteration_bounds = array<i64: 1>, scalar_prefetch = 0 : i64, scratch_operands = 0 : i64, tpu.core_type = #tpu.core_type<tc>, window_params = [{transform_indices = @transform_0, window_bounds = array<i64: 1>}, {transform_indices = @transform_1, window_bounds = array<i64: 2, 1024>}, {transform_indices = @transform_2, window_bounds = array<i64: 2, 1024>}]} {
    %c0 = arith.constant 0 : index
    %0 = memref.load %arg1[%c0] : memref<1xi32, #tpu.memory_space<smem>>
    %1 = tpu.iota {dimensions = array<i32: 0>} : vector<2x1024xi32>
    %2 = tpu.iota {dimensions = array<i32: 1>} : vector<2x1024xi32>
    %c2048_i32 = arith.constant 2048 : i32
    %3 = arith.muli %arg0, %c2048_i32 : i32
    %c1024_i32 = arith.constant 1024 : i32
    %4 = vector.broadcast %c1024_i32 : i32 to vector<2x1024xi32>
    %5 = arith.muli %1, %4 : vector<2x1024xi32>
    %6 = vector.broadcast %3 : i32 to vector<2x1024xi32>
    %7 = arith.addi %6, %5 : vector<2x1024xi32>
    %8 = arith.addi %7, %2 : vector<2x1024xi32>
    %c-626627285_i32 = arith.constant -626627285 : i32
    %9 = vector.broadcast %c-626627285_i32 : i32 to vector<2x1024xi32>
    %10 = arith.muli %8, %9 : vector<2x1024xi32>
    %11 = vector.broadcast %0 : i32 to vector<2x1024xi32>
    %12 = arith.addi %10, %11 : vector<2x1024xi32>
    %c0_i32 = arith.constant 0 : i32
    %13 = vector.broadcast %c0_i32 : i32 to vector<2x1024xi32>
    %14 = arith.addi %12, %13 : vector<2x1024xi32>
    %c16_i32 = arith.constant 16 : i32
    %15 = vector.broadcast %c16_i32 : i32 to vector<2x1024xi32>
    %16 = arith.shrsi %14, %15 : vector<2x1024xi32>
    %c65535_i32 = arith.constant 65535 : i32
    %17 = vector.broadcast %c65535_i32 : i32 to vector<2x1024xi32>
    %18 = arith.andi %16, %17 : vector<2x1024xi32>
    %19 = arith.xori %14, %18 : vector<2x1024xi32>
    %c-2048144789_i32 = arith.constant -2048144789 : i32
    %20 = vector.broadcast %c-2048144789_i32 : i32 to vector<2x1024xi32>
    %21 = arith.muli %19, %20 : vector<2x1024xi32>
    %c13_i32 = arith.constant 13 : i32
    %22 = vector.broadcast %c13_i32 : i32 to vector<2x1024xi32>
    %23 = arith.shrsi %21, %22 : vector<2x1024xi32>
    %c524287_i32 = arith.constant 524287 : i32
    %24 = vector.broadcast %c524287_i32 : i32 to vector<2x1024xi32>
    %25 = arith.andi %23, %24 : vector<2x1024xi32>
    %26 = arith.xori %21, %25 : vector<2x1024xi32>
    %c-1028477387_i32 = arith.constant -1028477387 : i32
    %27 = vector.broadcast %c-1028477387_i32 : i32 to vector<2x1024xi32>
    %28 = arith.muli %26, %27 : vector<2x1024xi32>
    %c16_i32_0 = arith.constant 16 : i32
    %29 = vector.broadcast %c16_i32_0 : i32 to vector<2x1024xi32>
    %30 = arith.shrsi %28, %29 : vector<2x1024xi32>
    %c65535_i32_1 = arith.constant 65535 : i32
    %31 = vector.broadcast %c65535_i32_1 : i32 to vector<2x1024xi32>
    %32 = arith.andi %30, %31 : vector<2x1024xi32>
    %33 = arith.xori %28, %32 : vector<2x1024xi32>
    %c16_i32_2 = arith.constant 16 : i32
    %34 = vector.broadcast %c16_i32_2 : i32 to vector<2x1024xi32>
    %35 = arith.shrsi %33, %34 : vector<2x1024xi32>
    %c65535_i32_3 = arith.constant 65535 : i32
    %36 = vector.broadcast %c65535_i32_3 : i32 to vector<2x1024xi32>
    %37 = arith.andi %35, %36 : vector<2x1024xi32>
    %c65535_i32_4 = arith.constant 65535 : i32
    %38 = vector.broadcast %c65535_i32_4 : i32 to vector<2x1024xi32>
    %39 = arith.andi %33, %38 : vector<2x1024xi32>
    %40 = arith.addi %37, %39 : vector<2x1024xi32>
    %c-1640531527_i32 = arith.constant -1640531527 : i32
    %41 = vector.broadcast %c-1640531527_i32 : i32 to vector<2x1024xi32>
    %42 = arith.addi %12, %41 : vector<2x1024xi32>
    %c16_i32_5 = arith.constant 16 : i32
    %43 = vector.broadcast %c16_i32_5 : i32 to vector<2x1024xi32>
    %44 = arith.shrsi %42, %43 : vector<2x1024xi32>
    %c65535_i32_6 = arith.constant 65535 : i32
    %45 = vector.broadcast %c65535_i32_6 : i32 to vector<2x1024xi32>
    %46 = arith.andi %44, %45 : vector<2x1024xi32>
    %47 = arith.xori %42, %46 : vector<2x1024xi32>
    %c-2048144789_i32_7 = arith.constant -2048144789 : i32
    %48 = vector.broadcast %c-2048144789_i32_7 : i32 to vector<2x1024xi32>
    %49 = arith.muli %47, %48 : vector<2x1024xi32>
    %c13_i32_8 = arith.constant 13 : i32
    %50 = vector.broadcast %c13_i32_8 : i32 to vector<2x1024xi32>
    %51 = arith.shrsi %49, %50 : vector<2x1024xi32>
    %c524287_i32_9 = arith.constant 524287 : i32
    %52 = vector.broadcast %c524287_i32_9 : i32 to vector<2x1024xi32>
    %53 = arith.andi %51, %52 : vector<2x1024xi32>
    %54 = arith.xori %49, %53 : vector<2x1024xi32>
    %c-1028477387_i32_10 = arith.constant -1028477387 : i32
    %55 = vector.broadcast %c-1028477387_i32_10 : i32 to vector<2x1024xi32>
    %56 = arith.muli %54, %55 : vector<2x1024xi32>
    %c16_i32_11 = arith.constant 16 : i32
    %57 = vector.broadcast %c16_i32_11 : i32 to vector<2x1024xi32>
    %58 = arith.shrsi %56, %57 : vector<2x1024xi32>
    %c65535_i32_12 = arith.constant 65535 : i32
    %59 = vector.broadcast %c65535_i32_12 : i32 to vector<2x1024xi32>
    %60 = arith.andi %58, %59 : vector<2x1024xi32>
    %61 = arith.xori %56, %60 : vector<2x1024xi32>
    %c16_i32_13 = arith.constant 16 : i32
    %62 = vector.broadcast %c16_i32_13 : i32 to vector<2x1024xi32>
    %63 = arith.shrsi %61, %62 : vector<2x1024xi32>
    %c65535_i32_14 = arith.constant 65535 : i32
    %64 = vector.broadcast %c65535_i32_14 : i32 to vector<2x1024xi32>
    %65 = arith.andi %63, %64 : vector<2x1024xi32>
    %c65535_i32_15 = arith.constant 65535 : i32
    %66 = vector.broadcast %c65535_i32_15 : i32 to vector<2x1024xi32>
    %67 = arith.andi %61, %66 : vector<2x1024xi32>
    %68 = arith.addi %65, %67 : vector<2x1024xi32>
    %69 = arith.addi %40, %68 : vector<2x1024xi32>
    %c1013904242_i32 = arith.constant 1013904242 : i32
    %70 = vector.broadcast %c1013904242_i32 : i32 to vector<2x1024xi32>
    %71 = arith.addi %12, %70 : vector<2x1024xi32>
    %c16_i32_16 = arith.constant 16 : i32
    %72 = vector.broadcast %c16_i32_16 : i32 to vector<2x1024xi32>
    %73 = arith.shrsi %71, %72 : vector<2x1024xi32>
    %c65535_i32_17 = arith.constant 65535 : i32
    %74 = vector.broadcast %c65535_i32_17 : i32 to vector<2x1024xi32>
    %75 = arith.andi %73, %74 : vector<2x1024xi32>
    %76 = arith.xori %71, %75 : vector<2x1024xi32>
    %c-2048144789_i32_18 = arith.constant -2048144789 : i32
    %77 = vector.broadcast %c-2048144789_i32_18 : i32 to vector<2x1024xi32>
    %78 = arith.muli %76, %77 : vector<2x1024xi32>
    %c13_i32_19 = arith.constant 13 : i32
    %79 = vector.broadcast %c13_i32_19 : i32 to vector<2x1024xi32>
    %80 = arith.shrsi %78, %79 : vector<2x1024xi32>
    %c524287_i32_20 = arith.constant 524287 : i32
    %81 = vector.broadcast %c524287_i32_20 : i32 to vector<2x1024xi32>
    %82 = arith.andi %80, %81 : vector<2x1024xi32>
    %83 = arith.xori %78, %82 : vector<2x1024xi32>
    %c-1028477387_i32_21 = arith.constant -1028477387 : i32
    %84 = vector.broadcast %c-1028477387_i32_21 : i32 to vector<2x1024xi32>
    %85 = arith.muli %83, %84 : vector<2x1024xi32>
    %c16_i32_22 = arith.constant 16 : i32
    %86 = vector.broadcast %c16_i32_22 : i32 to vector<2x1024xi32>
    %87 = arith.shrsi %85, %86 : vector<2x1024xi32>
    %c65535_i32_23 = arith.constant 65535 : i32
    %88 = vector.broadcast %c65535_i32_23 : i32 to vector<2x1024xi32>
    %89 = arith.andi %87, %88 : vector<2x1024xi32>
    %90 = arith.xori %85, %89 : vector<2x1024xi32>
    %c16_i32_24 = arith.constant 16 : i32
    %91 = vector.broadcast %c16_i32_24 : i32 to vector<2x1024xi32>
    %92 = arith.shrsi %90, %91 : vector<2x1024xi32>
    %c65535_i32_25 = arith.constant 65535 : i32
    %93 = vector.broadcast %c65535_i32_25 : i32 to vector<2x1024xi32>
    %94 = arith.andi %92, %93 : vector<2x1024xi32>
    %c65535_i32_26 = arith.constant 65535 : i32
    %95 = vector.broadcast %c65535_i32_26 : i32 to vector<2x1024xi32>
    %96 = arith.andi %90, %95 : vector<2x1024xi32>
    %97 = arith.addi %94, %96 : vector<2x1024xi32>
    %98 = arith.addi %69, %97 : vector<2x1024xi32>
    %99 = arith.sitofp %98 : vector<2x1024xi32> to vector<2x1024xf32>
    %cst = arith.constant 1.966050e+05 : f32
    %100 = vector.broadcast %cst : f32 to vector<2x1024xf32>
    %101 = arith.subf %99, %100 : vector<2x1024xf32>
    %cst_27 = arith.constant 2.15791861E-5 : f32
    %102 = vector.broadcast %cst_27 : f32 to vector<2x1024xf32>
    %103 = arith.mulf %101, %102 : vector<2x1024xf32>
    %c0_28 = arith.constant 0 : index
    %c0_29 = arith.constant 0 : index
    %104 = vector.load %arg2[%c0_28, %c0_29] : memref<2x1024xf32, #tpu.memory_space<vmem>>, vector<2x1024xf32>
    %cst_30 = arith.constant 1.000000e-01 : f32
    %105 = vector.broadcast %cst_30 : f32 to vector<2x1024xf32>
    %106 = arith.mulf %105, %103 : vector<2x1024xf32>
    %cst_31 = arith.constant 1.000000e+00 : f32
    %107 = vector.broadcast %cst_31 : f32 to vector<2x1024xf32>
    %108 = arith.addf %107, %106 : vector<2x1024xf32>
    %109 = arith.mulf %104, %108 : vector<2x1024xf32>
    %c0_32 = arith.constant 0 : index
    %c0_33 = arith.constant 0 : index
    %110 = vector.load %arg3[%c0_32, %c0_33] : memref<2x1024xf32, #tpu.memory_space<vmem>>, vector<2x1024xf32>
    tpu.vector_store %arg3[%c0_32, %c0_33], %109 {strides = array<i32>} : memref<2x1024xf32, #tpu.memory_space<vmem>>, vector<2x1024xf32>,
    return
  }
  func.func @transform_0(%arg0: i32) -> i32 {
    %c0_i32 = arith.constant 0 : i32
    %c0_i32_0 = arith.constant 0 : i32
    return %c0_i32 : i32
  }
  func.func @transform_1(%arg0: i32) -> (i32, i32) {
    %c0_i32 = arith.constant 0 : i32
    %c0_i32_0 = arith.constant 0 : i32
    return %arg0, %c0_i32 : i32, i32
  }
  func.func @transform_2(%arg0: i32) -> (i32, i32) {
    %c0_i32 = arith.constant 0 : i32
    %c0_i32_0 = arith.constant 0 : i32
    return %arg0, %c0_i32 : i32, i32
  }
}

</mosaic_0001>

<llo_original>
// kernel: tpu_custom_call.1
$region0: #{tpu_custom_call.1}
  #allocation0 [shape = 'u32[]', space=smem, size = 0x4, offset = 0x4, fixed_abs, tag = 'smem constant byte address 0x4 - core index']
  #allocation1 [shape = 'u32[144,128]{1,0:T(1,128)}', space=vmem, size = 0x12000, scoped, tag = 'internal scratch']
  #allocation2 [shape = 's32[1]{0:T(128)S(6)}', space=smem, size = 0x200, scoped, tag = 'scoped memory for tpu_custom_call.1']
  %s0 = inlined_call_operand.<no memory space> [shape: s32[1], index: 0, kind: input, shape index: {}]
  %s1 = inlined_call_operand.hbm [shape: f32[2,1024], index: 1, kind: input, shape index: {}]
  %s2 = inlined_call_operand.hbm [shape: f32[2,1024], index: 2, kind: output, shape index: {}]
  %s3 = sld [smem:[#allocation0]]
  $region22: #{tpu_custom_call.1} parent=0
    _
  %s5 = ssub.s32 1, %s3
  %s6 = scalar_select 0, %s5, %s3
  %7 = sst [smem:[#allocation2]] %s0
  $region1: #{tpu_custom_call.1} parent=0
    #allocation3 [shape = 'u8[8192]{0}', space=vmem, size = 0x2000, scoped, tag = 'input window, operand 1, single buffered']
    #allocation4 [shape = 's32[1]{0}', space=sflag, size = 0x4, scoped, tag = 'scoped memory for tpu_custom_call.1']
    #allocation5 [shape = 's32[1]{0}', space=sflag, size = 0x4, scoped, tag = 'scoped memory for tpu_custom_call.1']
    #allocation6 [shape = 'u8[8192]{0}', space=vmem, size = 0x2000, scoped, tag = 'output window, operand 0, single buffered']
    %8 = vsyncpa [#allocation4], 0
    %9 = vsyncpa [#allocation5], 0
    // Predicated region
    $region2: #{tpu_custom_call.1} parent=1 // pred_check
      _
    $region3: #{tpu_custom_call.1} parent=1 // pred_check_branch
      %11 = sbr.rel (0) target = $region5
    $region4: #{tpu_custom_call.1} parent=1 // pred_region
      _
    $region5: #{tpu_custom_call.1} parent=1 // pred_fallthru
      _
    // Predicated region
    $region6: #{tpu_custom_call.1} parent=1 // pred_check
      _
    $region7: #{tpu_custom_call.1} parent=1 // pred_check_branch
      %13 = sbr.rel (0) target = $region9
    $region8: #{tpu_custom_call.1} parent=1 // pred_region
      %s15 = ssub.s32 256, 256
      %16 = vsyncadd [#allocation4], %s15
      %s18 = sshll.u32 [#allocation3], 4
      %s19 = int_to_ptr.vmem [resolvable:$true] %s18
      %21 = dma.hbm_to_vmem [thread:$0]  %s1, 256, %s19, [#allocation4]
    $region9: #{tpu_custom_call.1} parent=1 // pred_fallthru
      _
    // Predicated region
    $region10: #{tpu_custom_call.1} parent=1 // pred_check
      _
    $region11: #{tpu_custom_call.1} parent=1 // pred_check_branch
      %23 = sbr.rel (0) target = $region13
    $region12: #{tpu_custom_call.1} parent=1 // pred_region
      %24 = dma.done [#allocation4], 256
    $region13: #{tpu_custom_call.1} parent=1 // pred_fallthru
      _
    %s25 = sld [smem:[#allocation2]]
    %v26 = vlaneseq
    %v27 = vshrl.u32 %v26, 7
    %v28 = vlaneseq
    %v29 = vand.u32 %v28, 127
    %v30 = vadd.s32 %v29, 128
    %v31 = vadd.s32 %v29, 256
    %v32 = vadd.s32 %v29, 384
    %v33 = vadd.s32 %v29, 512
    %v34 = vadd.s32 %v29, 640
    %v35 = vadd.s32 %v29, 768
    %v36 = vadd.s32 %v29, 896
    %s37 = smul.u32 0, 2048
    %v38 = vmul.u32 %v27, 1024
    %v39 = vstv %s37
    %v40 = vadd.s32 %v39, %v38
    %v41 = vadd.s32 %v40, %v29
    %v42 = vadd.s32 %v40, %v30
    %v43 = vadd.s32 %v40, %v31
    %v44 = vadd.s32 %v40, %v32
    %v45 = vadd.s32 %v40, %v33
    %v46 = vadd.s32 %v40, %v34
    %v47 = vadd.s32 %v40, %v35
    %v48 = vadd.s32 %v40, %v36
    %v49 = vmul.u32 %v41, 3668340011
    %v50 = vmul.u32 %v42, 3668340011
    %v51 = vmul.u32 %v43, 3668340011
    %v52 = vmul.u32 %v44, 3668340011
    %v53 = vmul.u32 %v45, 3668340011
    %v54 = vmul.u32 %v46, 3668340011
    %v55 = vmul.u32 %v47, 3668340011
    %v56 = vmul.u32 %v48, 3668340011
    %v57 = vstv %s25
    %v58 = vadd.s32 %v49, %v57
    %v59 = vadd.s32 %v50, %v57
    %v60 = vadd.s32 %v51, %v57
    %v61 = vadd.s32 %v52, %v57
    %v62 = vadd.s32 %v53, %v57
    %v63 = vadd.s32 %v54, %v57
    %v64 = vadd.s32 %v55, %v57
    %v65 = vadd.s32 %v56, %v57
    %v66 = vshra.s32 %v58, 16
    %v67 = vshra.s32 %v59, 16
    %v68 = vshra.s32 %v60, 16
    %v69 = vshra.s32 %v61, 16
    %v70 = vshra.s32 %v62, 16
    %v71 = vshra.s32 %v63, 16
    %v72 = vshra.s32 %v64, 16
    %v73 = vshra.s32 %v65, 16
    %v74 = vand.u32 %v66, 65535
    %v75 = vand.u32 %v67, 65535
    %v76 = vand.u32 %v68, 65535
    %v77 = vand.u32 %v69, 65535
    %v78 = vand.u32 %v70, 65535
    %v79 = vand.u32 %v71, 65535
    %v80 = vand.u32 %v72, 65535
    %v81 = vand.u32 %v73, 65535
    %v82 = vxor.u32 %v58, %v74
    %v83 = vxor.u32 %v59, %v75
    %v84 = vxor.u32 %v60, %v76
    %v85 = vxor.u32 %v61, %v77
    %v86 = vxor.u32 %v62, %v78
    %v87 = vxor.u32 %v63, %v79
    %v88 = vxor.u32 %v64, %v80
    %v89 = vxor.u32 %v65, %v81
    %v90 = vmul.u32 %v82, 2246822507
    %v91 = vmul.u32 %v83, 2246822507
    %v92 = vmul.u32 %v84, 2246822507
    %v93 = vmul.u32 %v85, 2246822507
    %v94 = vmul.u32 %v86, 2246822507
    %v95 = vmul.u32 %v87, 2246822507
    %v96 = vmul.u32 %v88, 2246822507
    %v97 = vmul.u32 %v89, 2246822507
    %v98 = vshra.s32 %v90, 13
    %v99 = vshra.s32 %v91, 13
    %v100 = vshra.s32 %v92, 13
    %v101 = vshra.s32 %v93, 13
    %v102 = vshra.s32 %v94, 13
    %v103 = vshra.s32 %v95, 13
    %v104 = vshra.s32 %v96, 13
    %v105 = vshra.s32 %v97, 13
    %v106 = vand.u32 %v98, 524287
    %v107 = vand.u32 %v99, 524287
    %v108 = vand.u32 %v100, 524287
    %v109 = vand.u32 %v101, 524287
    %v110 = vand.u32 %v102, 524287
    %v111 = vand.u32 %v103, 524287
    %v112 = vand.u32 %v104, 524287
    %v113 = vand.u32 %v105, 524287
    %v114 = vxor.u32 %v90, %v106
    %v115 = vxor.u32 %v91, %v107
    %v116 = vxor.u32 %v92, %v108
    %v117 = vxor.u32 %v93, %v109
    %v118 = vxor.u32 %v94, %v110
    %v119 = vxor.u32 %v95, %v111
    %v120 = vxor.u32 %v96, %v112
    %v121 = vxor.u32 %v97, %v113
    %v122 = vmul.u32 %v114, 3266489909
    %v123 = vmul.u32 %v115, 3266489909
    %v124 = vmul.u32 %v116, 3266489909
    %v125 = vmul.u32 %v117, 3266489909
    %v126 = vmul.u32 %v118, 3266489909
    %v127 = vmul.u32 %v119, 3266489909
    %v128 = vmul.u32 %v120, 3266489909
    %v129 = vmul.u32 %v121, 3266489909
    %v130 = vshra.s32 %v122, 16
    %v131 = vshra.s32 %v123, 16
    %v132 = vshra.s32 %v124, 16
    %v133 = vshra.s32 %v125, 16
    %v134 = vshra.s32 %v126, 16
    %v135 = vshra.s32 %v127, 16
    %v136 = vshra.s32 %v128, 16
    %v137 = vshra.s32 %v129, 16
    %v138 = vand.u32 %v130, 65535
    %v139 = vand.u32 %v131, 65535
    %v140 = vand.u32 %v132, 65535
    %v141 = vand.u32 %v133, 65535
    %v142 = vand.u32 %v134, 65535
    %v143 = vand.u32 %v135, 65535
    %v144 = vand.u32 %v136, 65535
    %v145 = vand.u32 %v137, 65535
    %v146 = vxor.u32 %v122, %v138
    %v147 = vxor.u32 %v123, %v139
    %v148 = vxor.u32 %v124, %v140
    %v149 = vxor.u32 %v125, %v141
    %v150 = vxor.u32 %v126, %v142
    %v151 = vxor.u32 %v127, %v143
    %v152 = vxor.u32 %v128, %v144
    %v153 = vxor.u32 %v129, %v145
    %v154 = vshra.s32 %v146, 16
    %v155 = vshra.s32 %v147, 16
    %v156 = vshra.s32 %v148, 16
    %v157 = vshra.s32 %v149, 16
    %v158 = vshra.s32 %v150, 16
    %v159 = vshra.s32 %v151, 16
    %v160 = vshra.s32 %v152, 16
    %v161 = vshra.s32 %v153, 16
    %v162 = vand.u32 %v154, 65535
    %v163 = vand.u32 %v155, 65535
    %v164 = vand.u32 %v156, 65535
    %v165 = vand.u32 %v157, 65535
    %v166 = vand.u32 %v158, 65535
    %v167 = vand.u32 %v159, 65535
    %v168 = vand.u32 %v160, 65535
    %v169 = vand.u32 %v161, 65535
    %v170 = vand.u32 %v146, 65535
    %v171 = vand.u32 %v147, 65535
    %v172 = vand.u32 %v148, 65535
    %v173 = vand.u32 %v149, 65535
    %v174 = vand.u32 %v150, 65535
    %v175 = vand.u32 %v151, 65535
    %v176 = vand.u32 %v152, 65535
    %v177 = vand.u32 %v153, 65535
    %v178 = vadd.s32 %v162, %v170
    %v179 = vadd.s32 %v163, %v171
    %v180 = vadd.s32 %v164, %v172
    %v181 = vadd.s32 %v165, %v173
    %v182 = vadd.s32 %v166, %v174
    %v183 = vadd.s32 %v167, %v175
    %v184 = vadd.s32 %v168, %v176
    %v185 = vadd.s32 %v169, %v177
    %v186 = vadd.s32 %v58, 2654435769
    %v187 = vadd.s32 %v59, 2654435769
    %v188 = vadd.s32 %v60, 2654435769
    %v189 = vadd.s32 %v61, 2654435769
    %v190 = vadd.s32 %v62, 2654435769
    %v191 = vadd.s32 %v63, 2654435769
    %v192 = vadd.s32 %v64, 2654435769
    %v193 = vadd.s32 %v65, 2654435769
    %v194 = vshra.s32 %v186, 16
    %v195 = vshra.s32 %v187, 16
    %v196 = vshra.s32 %v188, 16
    %v197 = vshra.s32 %v189, 16
    %v198 = vshra.s32 %v190, 16
    %v199 = vshra.s32 %v191, 16
    %v200 = vshra.s32 %v192, 16
    %v201 = vshra.s32 %v193, 16
    %v202 = vand.u32 %v194, 65535
    %v203 = vand.u32 %v195, 65535
    %v204 = vand.u32 %v196, 65535
    %v205 = vand.u32 %v197, 65535
    %v206 = vand.u32 %v198, 65535
    %v207 = vand.u32 %v199, 65535
    %v208 = vand.u32 %v200, 65535
    %v209 = vand.u32 %v201, 65535
    %v210 = vxor.u32 %v186, %v202
    %v211 = vxor.u32 %v187, %v203
    %v212 = vxor.u32 %v188, %v204
    %v213 = vxor.u32 %v189, %v205
    %v214 = vxor.u32 %v190, %v206
    %v215 = vxor.u32 %v191, %v207
    %v216 = vxor.u32 %v192, %v208
    %v217 = vxor.u32 %v193, %v209
    %v218 = vmul.u32 %v210, 2246822507
    %v219 = vmul.u32 %v211, 2246822507
    %v220 = vmul.u32 %v212, 2246822507
    %v221 = vmul.u32 %v213, 2246822507
    %v222 = vmul.u32 %v214, 2246822507
    %v223 = vmul.u32 %v215, 2246822507
    %v224 = vmul.u32 %v216, 2246822507
    %v225 = vmul.u32 %v217, 2246822507
    %v226 = vshra.s32 %v218, 13
    %v227 = vshra.s32 %v219, 13
    %v228 = vshra.s32 %v220, 13
    %v229 = vshra.s32 %v221, 13
    %v230 = vshra.s32 %v222, 13
    %v231 = vshra.s32 %v223, 13
    %v232 = vshra.s32 %v224, 13
    %v233 = vshra.s32 %v225, 13
    %v234 = vand.u32 %v226, 524287
    %v235 = vand.u32 %v227, 524287
    %v236 = vand.u32 %v228, 524287
    %v237 = vand.u32 %v229, 524287
    %v238 = vand.u32 %v230, 524287
    %v239 = vand.u32 %v231, 524287
    %v240 = vand.u32 %v232, 524287
    %v241 = vand.u32 %v233, 524287
    %v242 = vxor.u32 %v218, %v234
    %v243 = vxor.u32 %v219, %v235
    %v244 = vxor.u32 %v220, %v236
    %v245 = vxor.u32 %v221, %v237
    %v246 = vxor.u32 %v222, %v238
    %v247 = vxor.u32 %v223, %v239
    %v248 = vxor.u32 %v224, %v240
    %v249 = vxor.u32 %v225, %v241
    %v250 = vmul.u32 %v242, 3266489909
    %v251 = vmul.u32 %v243, 3266489909
    %v252 = vmul.u32 %v244, 3266489909
    %v253 = vmul.u32 %v245, 3266489909
    %v254 = vmul.u32 %v246, 3266489909
    %v255 = vmul.u32 %v247, 3266489909
    %v256 = vmul.u32 %v248, 3266489909
    %v257 = vmul.u32 %v249, 3266489909
    %v258 = vshra.s32 %v250, 16
    %v259 = vshra.s32 %v251, 16
    %v260 = vshra.s32 %v252, 16
    %v261 = vshra.s32 %v253, 16
    %v262 = vshra.s32 %v254, 16
    %v263 = vshra.s32 %v255, 16
    %v264 = vshra.s32 %v256, 16
    %v265 = vshra.s32 %v257, 16
    %v266 = vand.u32 %v258, 65535
    %v267 = vand.u32 %v259, 65535
    %v268 = vand.u32 %v260, 65535
    %v269 = vand.u32 %v261, 65535
    %v270 = vand.u32 %v262, 65535
    %v271 = vand.u32 %v263, 65535
    %v272 = vand.u32 %v264, 65535
    %v273 = vand.u32 %v265, 65535
    %v274 = vxor.u32 %v250, %v266
    %v275 = vxor.u32 %v251, %v267
    %v276 = vxor.u32 %v252, %v268
    %v277 = vxor.u32 %v253, %v269
    %v278 = vxor.u32 %v254, %v270
    %v279 = vxor.u32 %v255, %v271
    %v280 = vxor.u32 %v256, %v272
    %v281 = vxor.u32 %v257, %v273
    %v282 = vshra.s32 %v274, 16
    %v283 = vshra.s32 %v275, 16
    %v284 = vshra.s32 %v276, 16
    %v285 = vshra.s32 %v277, 16
    %v286 = vshra.s32 %v278, 16
    %v287 = vshra.s32 %v279, 16
    %v288 = vshra.s32 %v280, 16
    %v289 = vshra.s32 %v281, 16
    %v290 = vand.u32 %v282, 65535
    %v291 = vand.u32 %v283, 65535
    %v292 = vand.u32 %v284, 65535
    %v293 = vand.u32 %v285, 65535
    %v294 = vand.u32 %v286, 65535
    %v295 = vand.u32 %v287, 65535
    %v296 = vand.u32 %v288, 65535
    %v297 = vand.u32 %v289, 65535
    %v298 = vand.u32 %v274, 65535
    %v299 = vand.u32 %v275, 65535
    %v300 = vand.u32 %v276, 65535
    %v301 = vand.u32 %v277, 65535
    %v302 = vand.u32 %v278, 65535
    %v303 = vand.u32 %v279, 65535
    %v304 = vand.u32 %v280, 65535
    %v305 = vand.u32 %v281, 65535
    %v306 = vadd.s32 %v290, %v298
    %v307 = vadd.s32 %v291, %v299
    %v308 = vadd.s32 %v292, %v300
    %v309 = vadd.s32 %v293, %v301
    %v310 = vadd.s32 %v294, %v302
    %v311 = vadd.s32 %v295, %v303
    %v312 = vadd.s32 %v296, %v304
    %v313 = vadd.s32 %v297, %v305
    %v314 = vadd.s32 %v178, %v306
    %v315 = vadd.s32 %v179, %v307
    %v316 = vadd.s32 %v180, %v308
    %v317 = vadd.s32 %v181, %v309
    %v318 = vadd.s32 %v182, %v310
    %v319 = vadd.s32 %v183, %v311
    %v320 = vadd.s32 %v184, %v312
    %v321 = vadd.s32 %v185, %v313
    %v322 = vadd.s32 %v58, 1013904242
    %v323 = vadd.s32 %v59, 1013904242
    %v324 = vadd.s32 %v60, 1013904242
    %v325 = vadd.s32 %v61, 1013904242
    %v326 = vadd.s32 %v62, 1013904242
    %v327 = vadd.s32 %v63, 1013904242
    %v328 = vadd.s32 %v64, 1013904242
    %v329 = vadd.s32 %v65, 1013904242
    %v330 = vshra.s32 %v322, 16
    %v331 = vshra.s32 %v323, 16
    %v332 = vshra.s32 %v324, 16
    %v333 = vshra.s32 %v325, 16
    %v334 = vshra.s32 %v326, 16
    %v335 = vshra.s32 %v327, 16
    %v336 = vshra.s32 %v328, 16
    %v337 = vshra.s32 %v329, 16
    %v338 = vand.u32 %v330, 65535
    %v339 = vand.u32 %v331, 65535
    %v340 = vand.u32 %v332, 65535
    %v341 = vand.u32 %v333, 65535
    %v342 = vand.u32 %v334, 65535
    %v343 = vand.u32 %v335, 65535
    %v344 = vand.u32 %v336, 65535
    %v345 = vand.u32 %v337, 65535
    %v346 = vxor.u32 %v322, %v338
    %v347 = vxor.u32 %v323, %v339
    %v348 = vxor.u32 %v324, %v340
    %v349 = vxor.u32 %v325, %v341
    %v350 = vxor.u32 %v326, %v342
    %v351 = vxor.u32 %v327, %v343
    %v352 = vxor.u32 %v328, %v344
    %v353 = vxor.u32 %v329, %v345
    %v354 = vmul.u32 %v346, 2246822507
    %v355 = vmul.u32 %v347, 2246822507
    %v356 = vmul.u32 %v348, 2246822507
    %v357 = vmul.u32 %v349, 2246822507
    %v358 = vmul.u32 %v350, 2246822507
    %v359 = vmul.u32 %v351, 2246822507
    %v360 = vmul.u32 %v352, 2246822507
    %v361 = vmul.u32 %v353, 2246822507
    %v362 = vshra.s32 %v354, 13
    %v363 = vshra.s32 %v355, 13
    %v364 = vshra.s32 %v356, 13
    %v365 = vshra.s32 %v357, 13
    %v366 = vshra.s32 %v358, 13
    %v367 = vshra.s32 %v359, 13
    %v368 = vshra.s32 %v360, 13
    %v369 = vshra.s32 %v361, 13
    %v370 = vand.u32 %v362, 524287
    %v371 = vand.u32 %v363, 524287
    %v372 = vand.u32 %v364, 524287
    %v373 = vand.u32 %v365, 524287
    %v374 = vand.u32 %v366, 524287
    %v375 = vand.u32 %v367, 524287
    %v376 = vand.u32 %v368, 524287
    %v377 = vand.u32 %v369, 524287
    %v378 = vxor.u32 %v354, %v370
    %v379 = vxor.u32 %v355, %v371
    %v380 = vxor.u32 %v356, %v372
    %v381 = vxor.u32 %v357, %v373
    %v382 = vxor.u32 %v358, %v374
    %v383 = vxor.u32 %v359, %v375
    %v384 = vxor.u32 %v360, %v376
    %v385 = vxor.u32 %v361, %v377
    %v386 = vmul.u32 %v378, 3266489909
    %v387 = vmul.u32 %v379, 3266489909
    %v388 = vmul.u32 %v380, 3266489909
    %v389 = vmul.u32 %v381, 3266489909
    %v390 = vmul.u32 %v382, 3266489909
    %v391 = vmul.u32 %v383, 3266489909
    %v392 = vmul.u32 %v384, 3266489909
    %v393 = vmul.u32 %v385, 3266489909
    %v394 = vshra.s32 %v386, 16
    %v395 = vshra.s32 %v387, 16
    %v396 = vshra.s32 %v388, 16
    %v397 = vshra.s32 %v389, 16
    %v398 = vshra.s32 %v390, 16
    %v399 = vshra.s32 %v391, 16
    %v400 = vshra.s32 %v392, 16
    %v401 = vshra.s32 %v393, 16
    %v402 = vand.u32 %v394, 65535
    %v403 = vand.u32 %v395, 65535
    %v404 = vand.u32 %v396, 65535
    %v405 = vand.u32 %v397, 65535
    %v406 = vand.u32 %v398, 65535
    %v407 = vand.u32 %v399, 65535
    %v408 = vand.u32 %v400, 65535
    %v409 = vand.u32 %v401, 65535
    %v410 = vxor.u32 %v386, %v402
    %v411 = vxor.u32 %v387, %v403
    %v412 = vxor.u32 %v388, %v404
    %v413 = vxor.u32 %v389, %v405
    %v414 = vxor.u32 %v390, %v406
    %v415 = vxor.u32 %v391, %v407
    %v416 = vxor.u32 %v392, %v408
    %v417 = vxor.u32 %v393, %v409
    %v418 = vshra.s32 %v410, 16
    %v419 = vshra.s32 %v411, 16
    %v420 = vshra.s32 %v412, 16
    %v421 = vshra.s32 %v413, 16
    %v422 = vshra.s32 %v414, 16
    %v423 = vshra.s32 %v415, 16
    %v424 = vshra.s32 %v416, 16
    %v425 = vshra.s32 %v417, 16
    %v426 = vand.u32 %v418, 65535
    %v427 = vand.u32 %v419, 65535
    %v428 = vand.u32 %v420, 65535
    %v429 = vand.u32 %v421, 65535
    %v430 = vand.u32 %v422, 65535
    %v431 = vand.u32 %v423, 65535
    %v432 = vand.u32 %v424, 65535
    %v433 = vand.u32 %v425, 65535
    %v434 = vand.u32 %v410, 65535
    %v435 = vand.u32 %v411, 65535
    %v436 = vand.u32 %v412, 65535
    %v437 = vand.u32 %v413, 65535
    %v438 = vand.u32 %v414, 65535
    %v439 = vand.u32 %v415, 65535
    %v440 = vand.u32 %v416, 65535
    %v441 = vand.u32 %v417, 65535
    %v442 = vadd.s32 %v426, %v434
    %v443 = vadd.s32 %v427, %v435
    %v444 = vadd.s32 %v428, %v436
    %v445 = vadd.s32 %v429, %v437
    %v446 = vadd.s32 %v430, %v438
    %v447 = vadd.s32 %v431, %v439
    %v448 = vadd.s32 %v432, %v440
    %v449 = vadd.s32 %v433, %v441
    %v450 = vadd.s32 %v314, %v442
    %v451 = vadd.s32 %v315, %v443
    %v452 = vadd.s32 %v316, %v444
    %v453 = vadd.s32 %v317, %v445
    %v454 = vadd.s32 %v318, %v446
    %v455 = vadd.s32 %v319, %v447
    %v456 = vadd.s32 %v320, %v448
    %v457 = vadd.s32 %v321, %v449
    %v458 = vcvt.s32.f32 %v450
    %v459 = vcvt.s32.f32 %v451
    %v460 = vcvt.s32.f32 %v452
    %v461 = vcvt.s32.f32 %v453
    %v462 = vcvt.s32.f32 %v454
    %v463 = vcvt.s32.f32 %v455
    %v464 = vcvt.s32.f32 %v456
    %v465 = vcvt.s32.f32 %v457
    %v466 = vsub.f32 %v458, 196605.0
    %v467 = vsub.f32 %v459, 196605.0
    %v468 = vsub.f32 %v460, 196605.0
    %v469 = vsub.f32 %v461, 196605.0
    %v470 = vsub.f32 %v462, 196605.0
    %v471 = vsub.f32 %v463, 196605.0
    %v472 = vsub.f32 %v464, 196605.0
    %v473 = vsub.f32 %v465, 196605.0
    %v474 = vmul.f32 %v466, 2.1579186e-05
    %v475 = vmul.f32 %v467, 2.1579186e-05
    %v476 = vmul.f32 %v468, 2.1579186e-05
    %v477 = vmul.f32 %v469, 2.1579186e-05
    %v478 = vmul.f32 %v470, 2.1579186e-05
    %v479 = vmul.f32 %v471, 2.1579186e-05
    %v480 = vmul.f32 %v472, 2.1579186e-05
    %v481 = vmul.f32 %v473, 2.1579186e-05
    %v482 = vld [vmem:[#allocation3] sm:$0xff]
    %v483 = vld [vmem:[#allocation3 + $0x8] sm:$0xff]
    %v484 = vmul.f32 %v474, 0.1
    %v485 = vmul.f32 %v475, 0.1
    %v486 = vmul.f32 %v476, 0.1
    %v487 = vmul.f32 %v477, 0.1
    %v488 = vmul.f32 %v478, 0.1
    %v489 = vmul.f32 %v479, 0.1
    %v490 = vmul.f32 %v480, 0.1
    %v491 = vmul.f32 %v481, 0.1
    %v492 = vadd.f32 %v484, 1.0
    %v493 = vadd.f32 %v485, 1.0
    %v494 = vadd.f32 %v486, 1.0
    %v495 = vadd.f32 %v487, 1.0
    %v496 = vadd.f32 %v488, 1.0
    %v497 = vadd.f32 %v489, 1.0
    %v498 = vadd.f32 %v490, 1.0
    %v499 = vadd.f32 %v491, 1.0
    %v508 = vcombine.low %v492, %v493
    %v509 = vcombine.low %v494, %v495
    %v511 = vunpack.c.l.s4 1983009808
    %v512 = vunpack.c.0.s8 %v511
    %v513 = vlaneseq
    %v514 = vshrl.u32 %v513, 7
    %v515 = vsub.s32 %v512, %v514
    %v516 = vrot.slane %v508, %v515
    %v518 = vunpack.c.l.s4 1983009808
    %v519 = vunpack.c.0.s8 %v518
    %v520 = vlaneseq
    %v521 = vshrl.u32 %v520, 7
    %v522 = vsub.s32 %v519, %v521
    %v523 = vrot.slane %v509, %v522
    %v524 = vcombine.low %v516, %v523
    %v525 = vcombine.low %v496, %v497
    %v526 = vcombine.low %v498, %v499
    %v528 = vunpack.c.l.s4 1983009808
    %v529 = vunpack.c.0.s8 %v528
    %v530 = vlaneseq
    %v531 = vshrl.u32 %v530, 7
    %v532 = vsub.s32 %v529, %v531
    %v533 = vrot.slane %v525, %v532
    %v535 = vunpack.c.l.s4 1983009808
    %v536 = vunpack.c.0.s8 %v535
    %v537 = vlaneseq
    %v538 = vshrl.u32 %v537, 7
    %v539 = vsub.s32 %v536, %v538
    %v540 = vrot.slane %v526, %v539
    %v541 = vcombine.low %v533, %v540
    %v544 = vmul.f32 %v482, %v524
    %v545 = vmul.f32 %v483, %v541
    %546 = vst [vmem:[#allocation6] sm:$0xff] %v544
    %547 = vst [vmem:[#allocation6 + $0x8] sm:$0xff] %v545
    // Predicated region
    $region14: #{tpu_custom_call.1} parent=1 // pred_check
      _
    $region15: #{tpu_custom_call.1} parent=1 // pred_check_branch
      %549 = sbr.rel (0) target = $region17
    $region16: #{tpu_custom_call.1} parent=1 // pred_region
      %s551 = ssub.s32 256, 256
      %552 = vsyncadd [#allocation5], %s551
      %s554 = sshll.u32 [#allocation6], 4
      %s555 = int_to_ptr.vmem [resolvable:$true] %s554
      %557 = dma.vmem_to_hbm [thread:$0]  %s555, 256, %s2, [#allocation5]
    $region17: #{tpu_custom_call.1} parent=1 // pred_fallthru
      _
    // Predicated region
    $region18: #{tpu_custom_call.1} parent=1 // pred_check
      _
    $region19: #{tpu_custom_call.1} parent=1 // pred_check_branch
      %559 = sbr.rel (0) target = $region21
    $region20: #{tpu_custom_call.1} parent=1 // pred_region
      %560 = dma.done [#allocation5], 256
    $region21: #{tpu_custom_call.1} parent=1 // pred_fallthru
      _
    %561 = vsyncpa [#allocation4], 1
    %562 = vsyncpa [#allocation5], 1

</llo_original>
